<compile_context>
chip_gen: v7x
topology: tpu7x:2x2x1
jax: 0.10.0
libtpu: 0.0.40
codegen_flags: <defaults>
</compile_context>

<pallas_src>
import functools

import jax
import jax.numpy as jnp
from jax import lax
from jax.experimental import pallas as pl
from jax.experimental.pallas import tpu as pltpu

_NEG_BIG = -1e30  # large finite negative: safer than -inf for masking


# ---------------------------------------------------------------------------
# Stage 1: fused QKV projection  x @ [Wq^T | Wk^T | Wv^T]  ->  head-major
# (B, H, T, head_dim) Q, K, V in the compute dtype (bf16), Q pre-scaled.
# Runs once per token (hoisted out of the flash kv loop).
# ---------------------------------------------------------------------------
def _qkv_proj_kernel(x_ref, w_ref, q_ref, k_ref, v_ref, *, num_heads, head_dim):
    d_out = num_heads * head_dim
    scale = 1.0 / (float(head_dim) ** 0.5)
    # Cast activations to the weight (compute) dtype in VMEM so the MXU runs its
    # native bf16 path; accumulate in f32.
    x = x_ref[0].astype(w_ref.dtype)                               # (T_TILE, d_in)
    proj = jnp.dot(x, w_ref[...], preferred_element_type=jnp.float32)  # (T_TILE, 3*d_out)
    # One-time lane split into head-major layout (done once per token, not per q-tile).
    for h in range(num_heads):
        lo = h * head_dim
        q_ref[0, h] = (proj[:, lo:lo + head_dim] * scale).astype(q_ref.dtype)
        k_ref[0, h] = proj[:, d_out + lo:d_out + lo + head_dim].astype(k_ref.dtype)
        v_ref[0, h] = proj[:, 2 * d_out + lo:2 * d_out + lo + head_dim].astype(v_ref.dtype)


def _qkv_projection(x, w_qkv, *, num_heads, head_dim, t_tile):
    B, T, d_in = x.shape
    d_out = num_heads * head_dim
    assert T % t_tile == 0
    kernel = functools.partial(_qkv_proj_kernel, num_heads=num_heads, head_dim=head_dim)
    hm_shape = jax.ShapeDtypeStruct((B, num_heads, T, head_dim), w_qkv.dtype)
    hm_spec = pl.BlockSpec((1, num_heads, t_tile, head_dim), lambda b, ti: (b, 0, ti, 0))
    return pl.pallas_call(
        kernel,
        out_shape=(hm_shape, hm_shape, hm_shape),
        grid_spec=pltpu.PrefetchScalarGridSpec(
            num_scalar_prefetch=0,
            grid=(B, T // t_tile),
            in_specs=[
                pl.BlockSpec((1, t_tile, d_in), lambda b, ti: (b, ti, 0)),
                # NOTE: for very large d_model the fused (d_in, 3*d_out) weight should be
                # tiled along N with an extra grid axis to respect v7x's 64 MiB VMEM.
                pl.BlockSpec((d_in, 3 * d_out), lambda b, ti: (0, 0)),
            ],
            out_specs=(hm_spec, hm_spec, hm_spec),
        ),
        compiler_params=pltpu.CompilerParams(
            dimension_semantics=("parallel", "parallel")),
    )(x, w_qkv)


# ---------------------------------------------------------------------------
# Stage 2: flash attention (online softmax over kv tiles) + fused output proj.
# Q/K/V arrive head-major (B, H, T, head_dim); scores and P@V are batched
# dot_generals over the head axis (no per-head lane slicing in the hot loop).
# ---------------------------------------------------------------------------
def _flash_kernel(q_ref, k_ref, v_ref, wo_ref, bo_ref, o_ref,
                  m_sc, l_sc, acc_sc, ctx_sc, *, num_heads, head_dim):
    qi = pl.program_id(1)
    kvi = pl.program_id(2)
    tq = q_ref.shape[2]
    tkv = k_ref.shape[2]

    # ---- per (batch, q-tile) init -------------------------------------------------
    @pl.when(kvi == 0)
    def _init():
        m_sc[...] = jnp.full(m_sc.shape, _NEG_BIG, m_sc.dtype)
        l_sc[...] = jnp.zeros(l_sc.shape, l_sc.dtype)
        acc_sc[...] = jnp.zeros(acc_sc.shape, acc_sc.dtype)

    def _step(apply_mask):
        q = q_ref[0]                                           # (H, TQ, HD) pre-scaled
        k = k_ref[0]                                           # (H, TKV, HD)
        v = v_ref[0]                                           # (H, TKV, HD)

        # q @ k^T batched over heads, contracting the last dims (no materialized .T).
        s = lax.dot_general(q, k, (((2,), (2,)), ((0,), (0,))),
                            preferred_element_type=jnp.float32)  # (H, TQ, TKV)
        if apply_mask:
            # Diagonal tile only (tq == tkv and qi == kvi): mask is col > row.
            row = lax.broadcasted_iota(jnp.int32, (tq, tkv), 0)
            col = lax.broadcasted_iota(jnp.int32, (tq, tkv), 1)
            s = jnp.where(col > row, _NEG_BIG, s)

        m_prev = m_sc[...]                                     # (H, TQ, 1)
        m_new = jnp.maximum(m_prev, jnp.max(s, axis=-1, keepdims=True))
        alpha = jnp.exp(m_prev - m_new)
        p = jnp.exp(s - m_new)                                 # (H, TQ, TKV) f32
        l_sc[...] = alpha * l_sc[...] + jnp.sum(p, axis=-1, keepdims=True)
        acc_sc[...] = alpha * acc_sc[...] + lax.dot_general(
            p.astype(v.dtype), v, (((2,), (1,)), ((0,), (0,))),
            preferred_element_type=jnp.float32)                # (H, TQ, HD)
        m_sc[...] = m_new

    # ---- interior tiles: fully visible, no mask work ------------------------------
    @pl.when(kvi < qi)
    def _interior():
        _step(apply_mask=False)

    # ---- diagonal tile: apply the causal mask --------------------------------------
    @pl.when(kvi == qi)
    def _diagonal():
        _step(apply_mask=True)

    # ---- finalize at the LAST VALID kv step (kvi == qi, causal) --------------------
    @pl.when(kvi == qi)
    def _finalize():
        inv_l = pl.reciprocal(l_sc[...], approx=True)          # EUP, ~free
        ctx = acc_sc[...] * inv_l                              # (H, TQ, HD) f32
        # Pack heads into a lane-dense (TQ, d_out) scratch once, then ONE
        # d_out-deep output-projection matmul (good MXU fill, single push).
        for h in range(num_heads):
            lo = h * head_dim
            ctx_sc[:, lo:lo + head_dim] = ctx[h].astype(ctx_sc.dtype)
        out = jnp.dot(ctx_sc[...], wo_ref[...], preferred_element_type=jnp.float32)
        o_ref[0] = (out + bo_ref[...]).astype(o_ref.dtype)


def _choose_seq_tile(t, max_tile=256):
    """Largest sequence tile <= max_tile dividing t; prefers multiples of 128
    (MXU-friendly on v5e's 4x128x128 array), falls back to multiples of 8."""
    if t <= max_tile:
        return t
    for cand in range(max_tile, 0, -128):
        if cand % 128 == 0 and t % cand == 0:
            return cand
    for cand in range(max_tile, 7, -8):
        if t % cand == 0:
            return cand
    return t


def prepare_params(W_query, W_key, W_value, W_out, b_out, *, compute_dtype=jnp.bfloat16):
    """One-time parameter prep (off the hot path): transpose to (d_in, d_out) layouts,
    fuse Q/K/V weights, cast to the bf16 compute dtype for native-rate MXU."""
    w_qkv = jnp.concatenate([W_query.T, W_key.T, W_value.T], axis=1).astype(compute_dtype)
    w_o = W_out.T.astype(compute_dtype)                        # (d_out, d_out)
    b_o = b_out.reshape(1, -1).astype(jnp.float32)             # added in f32
    return w_qkv, w_o, b_o


def multi_head_attention(x, w_qkv, w_o, b_o, *, num_heads):
    """x: (B, T, d_in); params from prepare_params(); returns (B, T, d_out)."""
    B, T, d_in = x.shape
    d_out = w_o.shape[0]
    assert d_out % num_heads == 0
    head_dim = d_out // num_heads
    compute_dtype = w_qkv.dtype

    tq = _choose_seq_tile(T)
    tkv = tq                      # diagonal-mask / finalize logic assumes tq == tkv
    assert T % tq == 0
    n_qt, n_kvt = T // tq, T // tkv

    # Stage 1: QKV projection (once per token), head-major bf16 outputs.
    q, k, v = _qkv_projection(x, w_qkv, num_heads=num_heads,
                              head_dim=head_dim, t_tile=tq)

    # Stage 2: flash attention + fused output projection.
    kernel = functools.partial(_flash_kernel, num_heads=num_heads, head_dim=head_dim)

    qkv_spec_q = pl.BlockSpec((1, num_heads, tq, head_dim),
                              lambda b, qi, kvi: (b, 0, qi, 0))
    # Clamp kv index for causal skipping: fully-masked tiles re-map to the
    # already-resident block -> no new DMA (compute is skipped by pl.when).
    qkv_spec_kv = pl.BlockSpec((1, num_heads, tkv, head_dim),
                               lambda b, qi, kvi: (b, 0, jnp.minimum(kvi, qi), 0))

    return pl.pallas_call(
        kernel,
        out_shape=jax.ShapeDtypeStruct((B, T, d_out), x.dtype),
        grid_spec=pltpu.PrefetchScalarGridSpec(
            num_scalar_prefetch=0,
            grid=(B, n_qt, n_kvt),
            in_specs=[
                qkv_spec_q,                                               # Q tile
                qkv_spec_kv,                                              # K tile
                qkv_spec_kv,                                              # V tile
                pl.BlockSpec((d_out, d_out), lambda b, qi, kvi: (0, 0)),  # Wo^T
                pl.BlockSpec((1, d_out), lambda b, qi, kvi: (0, 0)),      # b_out
            ],
            out_specs=pl.BlockSpec((1, tq, d_out), lambda b, qi, kvi: (b, qi, 0)),
            scratch_shapes=[
                pltpu.VMEM((num_heads, tq, 1), jnp.float32),          # m (running max)
                pltpu.VMEM((num_heads, tq, 1), jnp.float32),          # l (running sum)
                pltpu.VMEM((num_heads, tq, head_dim), jnp.float32),   # acc (context)
                pltpu.VMEM((tq, d_out), compute_dtype),               # lane-dense ctx
            ],
        ),
        compiler_params=pltpu.CompilerParams(
            dimension_semantics=("parallel", "parallel", "arbitrary")),
    )(q, k, v, w_o, b_o)


# ---------------------------------------------------------------------------
# Pure-JAX reference mirroring the PyTorch forward (eval mode), f32 throughout.
# ---------------------------------------------------------------------------
def _reference(x, Wq, Wk, Wv, Wo, bo, num_heads):
    B, T, d_in = x.shape
    d_out = Wq.shape[0]
    hd = d_out // num_heads
    q = (x @ Wq.T).reshape(B, T, num_heads, hd).transpose(0, 2, 1, 3)
    k = (x @ Wk.T).reshape(B, T, num_heads, hd).transpose(0, 2, 1, 3)
    v = (x @ Wv.T).reshape(B, T, num_heads, hd).transpose(0, 2, 1, 3)
    scores = jnp.einsum('bhqd,bhkd->bhqk', q, k)
    mask = jnp.triu(jnp.ones((T, T), dtype=bool), k=1)
    scores = jnp.where(mask, -jnp.inf, scores)
    w = jax.nn.softmax(scores / hd ** 0.5, axis=-1)
    ctx = jnp.einsum('bhqk,bhkd->bhqd', w, v).transpose(0, 2, 1, 3).reshape(B, T, d_out)
    return ctx @ Wo.T + bo


def _run_case(key, B, T, D_IN, D_OUT, NUM_HEADS):
    kx, kq, kk, kvw, ko, kb = jax.random.split(key, 6)
    bound_in = 1.0 / (D_IN ** 0.5)
    bound_out = 1.0 / (D_OUT ** 0.5)
    x = jax.random.normal(kx, (B, T, D_IN), dtype=jnp.float32)
    Wq = jax.random.uniform(kq, (D_OUT, D_IN), minval=-bound_in, maxval=bound_in, dtype=jnp.float32)
    Wk = jax.random.uniform(kk, (D_OUT, D_IN), minval=-bound_in, maxval=bound_in, dtype=jnp.float32)
    Wv = jax.random.uniform(kvw, (D_OUT, D_IN), minval=-bound_in, maxval=bound_in, dtype=jnp.float32)
    Wo = jax.random.uniform(ko, (D_OUT, D_OUT), minval=-bound_out, maxval=bound_out, dtype=jnp.float32)
    bo = jax.random.uniform(kb, (D_OUT,), minval=-bound_out, maxval=bound_out, dtype=jnp.float32)

    w_qkv, w_o, b_o = prepare_params(Wq, Wk, Wv, Wo, bo)        # once, off the hot path
    out = multi_head_attention(x, w_qkv, w_o, b_o, num_heads=NUM_HEADS)
    out = jax.block_until_ready(out)

    ref = _reference(x, Wq, Wk, Wv, Wo, bo, NUM_HEADS)
    assert out.shape == (B, T, D_OUT)
    # Tolerance covers bf16 MXU operands, the approximate EUP reciprocal and the
    # online-softmax reassociation; structural bugs would produce O(0.1+) errors.
    assert jnp.allclose(out, ref, atol=3e-2, rtol=3e-2), "mismatch vs pure-JAX reference"


if __name__ == "__main__":
    key = jax.random.PRNGKey(0)
    k1, k2 = jax.random.split(key, 2)

    # Small shapes consistent with the module: batch=2, seq=8, d_in=32, d_out=32.
    _run_case(k1, B=2, T=8, D_IN=32, D_OUT=32, NUM_HEADS=4)

    # Larger case exercising the multi-tile flash path: 2 q-tiles x 2 kv-tiles,
    # clamped causal kv DMA, diagonal-only masking, cross-tile online softmax.
    _run_case(k2, B=1, T=512, D_IN=64, D_OUT=128, NUM_HEADS=2)

    print("KERNEL_OK")
</pallas_src>

<mosaic_0001>
module attributes {stable_mosaic.version = 11 : i64} {
  func.func @_qkv_proj_kernel(%arg0: i32, %arg1: i32, %arg2: memref<1x8x32xf32, #tpu.memory_space<vmem>>, %arg3: memref<32x96xbf16, #tpu.memory_space<vmem>>, %arg4: memref<1x4x8x8xbf16, #tpu.memory_space<vmem>>, %arg5: memref<1x4x8x8xbf16, #tpu.memory_space<vmem>>, %arg6: memref<1x4x8x8xbf16, #tpu.memory_space<vmem>>) attributes {dimension_semantics = [#tpu.dimension_semantics<parallel>, #tpu.dimension_semantics<parallel>], iteration_bounds = array<i64: 2, 1>, scalar_prefetch = 0 : i64, scratch_operands = 0 : i64, tpu.core_type = #tpu.core_type<tc>, window_params = [{transform_indices = @transform_0, window_bounds = array<i64: 1, 8, 32>}, {pipeline_mode = #tpu.pipeline_mode<synchronous>, transform_indices = @transform_1, window_bounds = array<i64: 32, 96>}, {transform_indices = @transform_2, window_bounds = array<i64: 1, 4, 8, 8>}, {transform_indices = @transform_3, window_bounds = array<i64: 1, 4, 8, 8>}, {transform_indices = @transform_4, window_bounds = array<i64: 1, 4, 8, 8>}]} {
    %c0 = arith.constant 0 : index
    %c0_0 = arith.constant 0 : index
    %c0_1 = arith.constant 0 : index
    %0 = vector.load %arg2[%c0, %c0_0, %c0_1] : memref<1x8x32xf32, #tpu.memory_space<vmem>>, vector<1x8x32xf32>
    %1 = vector.shape_cast %0 : vector<1x8x32xf32> to vector<8x32xf32>
    %2 = arith.truncf %1 : vector<8x32xf32> to vector<8x32xbf16>
    %c0_2 = arith.constant 0 : index
    %c0_3 = arith.constant 0 : index
    %3 = vector.load %arg3[%c0_2, %c0_3] : memref<32x96xbf16, #tpu.memory_space<vmem>>, vector<32x96xbf16>
    %cst = arith.constant dense<0.000000e+00> : vector<8x96xf32>
    %4 = tpu.matmul %2, %3, %cst {dimension_numbers = #tpu.dot_dimension_numbers<[1], [0], [0], [1], [0, 0, 1, 1], [], []>} : vector<8x32xbf16>, vector<32x96xbf16>, vector<8x96xf32> -> vector<8x96xf32>
    %5 = vector.extract_strided_slice %4 {offsets = [0, 0], sizes = [8, 8], strides = [1, 1]} : vector<8x96xf32> to vector<8x8xf32>
    %cst_4 = arith.constant 0.353553385 : f32
    %6 = vector.broadcast %cst_4 : f32 to vector<8x8xf32>
    %7 = arith.mulf %5, %6 : vector<8x8xf32>
    %8 = arith.truncf %7 : vector<8x8xf32> to vector<8x8xbf16>
    %c0_5 = arith.constant 0 : index
    %c0_6 = arith.constant 0 : index
    %c0_7 = arith.constant 0 : index
    %c0_8 = arith.constant 0 : index
    %9 = vector.load %arg4[%c0_5, %c0_6, %c0_7, %c0_8] : memref<1x4x8x8xbf16, #tpu.memory_space<vmem>>, vector<1x1x8x8xbf16>
    %10 = vector.shape_cast %9 : vector<1x1x8x8xbf16> to vector<8x8xbf16>
    %11 = vector.shape_cast %8 : vector<8x8xbf16> to vector<1x1x8x8xbf16>
    tpu.vector_store %arg4[%c0_5, %c0_6, %c0_7, %c0_8], %11 {strides = array<i32>} : memref<1x4x8x8xbf16, #tpu.memory_space<vmem>>, vector<1x1x8x8xbf16>,
    %12 = vector.extract_strided_slice %4 {offsets = [0, 32], sizes = [8, 8], strides = [1, 1]} : vector<8x96xf32> to vector<8x8xf32>
    %13 = arith.truncf %12 : vector<8x8xf32> to vector<8x8xbf16>
    %c0_9 = arith.constant 0 : index
    %c0_10 = arith.constant 0 : index
    %c0_11 = arith.constant 0 : index
    %c0_12 = arith.constant 0 : index
    %14 = vector.load %arg5[%c0_9, %c0_10, %c0_11, %c0_12] : memref<1x4x8x8xbf16, #tpu.memory_space<vmem>>, vector<1x1x8x8xbf16>
    %15 = vector.shape_cast %14 : vector<1x1x8x8xbf16> to vector<8x8xbf16>
    %16 = vector.shape_cast %13 : vector<8x8xbf16> to vector<1x1x8x8xbf16>
    tpu.vector_store %arg5[%c0_9, %c0_10, %c0_11, %c0_12], %16 {strides = array<i32>} : memref<1x4x8x8xbf16, #tpu.memory_space<vmem>>, vector<1x1x8x8xbf16>,
    %17 = vector.extract_strided_slice %4 {offsets = [0, 64], sizes = [8, 8], strides = [1, 1]} : vector<8x96xf32> to vector<8x8xf32>
    %18 = arith.truncf %17 : vector<8x8xf32> to vector<8x8xbf16>
    %c0_13 = arith.constant 0 : index
    %c0_14 = arith.constant 0 : index
    %c0_15 = arith.constant 0 : index
    %c0_16 = arith.constant 0 : index
    %19 = vector.load %arg6[%c0_13, %c0_14, %c0_15, %c0_16] : memref<1x4x8x8xbf16, #tpu.memory_space<vmem>>, vector<1x1x8x8xbf16>
    %20 = vector.shape_cast %19 : vector<1x1x8x8xbf16> to vector<8x8xbf16>
    %21 = vector.shape_cast %18 : vector<8x8xbf16> to vector<1x1x8x8xbf16>
    tpu.vector_store %arg6[%c0_13, %c0_14, %c0_15, %c0_16], %21 {strides = array<i32>} : memref<1x4x8x8xbf16, #tpu.memory_space<vmem>>, vector<1x1x8x8xbf16>,
    %22 = vector.extract_strided_slice %4 {offsets = [0, 8], sizes = [8, 8], strides = [1, 1]} : vector<8x96xf32> to vector<8x8xf32>
    %cst_17 = arith.constant 0.353553385 : f32
    %23 = vector.broadcast %cst_17 : f32 to vector<8x8xf32>
    %24 = arith.mulf %22, %23 : vector<8x8xf32>
    %25 = arith.truncf %24 : vector<8x8xf32> to vector<8x8xbf16>
    %c0_18 = arith.constant 0 : index
    %c1 = arith.constant 1 : index
    %c0_19 = arith.constant 0 : index
    %c0_20 = arith.constant 0 : index
    %26 = vector.load %arg4[%c0_18, %c1, %c0_19, %c0_20] : memref<1x4x8x8xbf16, #tpu.memory_space<vmem>>, vector<1x1x8x8xbf16>
    %27 = vector.shape_cast %26 : vector<1x1x8x8xbf16> to vector<8x8xbf16>
    %28 = vector.shape_cast %25 : vector<8x8xbf16> to vector<1x1x8x8xbf16>
    tpu.vector_store %arg4[%c0_18, %c1, %c0_19, %c0_20], %28 {strides = array<i32>} : memref<1x4x8x8xbf16, #tpu.memory_space<vmem>>, vector<1x1x8x8xbf16>,
    %29 = vector.extract_strided_slice %4 {offsets = [0, 40], sizes = [8, 8], strides = [1, 1]} : vector<8x96xf32> to vector<8x8xf32>
    %30 = arith.truncf %29 : vector<8x8xf32> to vector<8x8xbf16>
    %c0_21 = arith.constant 0 : index
    %c1_22 = arith.constant 1 : index
    %c0_23 = arith.constant 0 : index
    %c0_24 = arith.constant 0 : index
    %31 = vector.load %arg5[%c0_21, %c1_22, %c0_23, %c0_24] : memref<1x4x8x8xbf16, #tpu.memory_space<vmem>>, vector<1x1x8x8xbf16>
    %32 = vector.shape_cast %31 : vector<1x1x8x8xbf16> to vector<8x8xbf16>
    %33 = vector.shape_cast %30 : vector<8x8xbf16> to vector<1x1x8x8xbf16>
    tpu.vector_store %arg5[%c0_21, %c1_22, %c0_23, %c0_24], %33 {strides = array<i32>} : memref<1x4x8x8xbf16, #tpu.memory_space<vmem>>, vector<1x1x8x8xbf16>,
    %34 = vector.extract_strided_slice %4 {offsets = [0, 72], sizes = [8, 8], strides = [1, 1]} : vector<8x96xf32> to vector<8x8xf32>
    %35 = arith.truncf %34 : vector<8x8xf32> to vector<8x8xbf16>
    %c0_25 = arith.constant 0 : index
    %c1_26 = arith.constant 1 : index
    %c0_27 = arith.constant 0 : index
    %c0_28 = arith.constant 0 : index
    %36 = vector.load %arg6[%c0_25, %c1_26, %c0_27, %c0_28] : memref<1x4x8x8xbf16, #tpu.memory_space<vmem>>, vector<1x1x8x8xbf16>
    %37 = vector.shape_cast %36 : vector<1x1x8x8xbf16> to vector<8x8xbf16>
    %38 = vector.shape_cast %35 : vector<8x8xbf16> to vector<1x1x8x8xbf16>
    tpu.vector_store %arg6[%c0_25, %c1_26, %c0_27, %c0_28], %38 {strides = array<i32>} : memref<1x4x8x8xbf16, #tpu.memory_space<vmem>>, vector<1x1x8x8xbf16>,
    %39 = vector.extract_strided_slice %4 {offsets = [0, 16], sizes = [8, 8], strides = [1, 1]} : vector<8x96xf32> to vector<8x8xf32>
    %cst_29 = arith.constant 0.353553385 : f32
    %40 = vector.broadcast %cst_29 : f32 to vector<8x8xf32>
    %41 = arith.mulf %39, %40 : vector<8x8xf32>
    %42 = arith.truncf %41 : vector<8x8xf32> to vector<8x8xbf16>
    %c0_30 = arith.constant 0 : index
    %c2 = arith.constant 2 : index
    %c0_31 = arith.constant 0 : index
    %c0_32 = arith.constant 0 : index
    %43 = vector.load %arg4[%c0_30, %c2, %c0_31, %c0_32] : memref<1x4x8x8xbf16, #tpu.memory_space<vmem>>, vector<1x1x8x8xbf16>
    %44 = vector.shape_cast %43 : vector<1x1x8x8xbf16> to vector<8x8xbf16>
    %45 = vector.shape_cast %42 : vector<8x8xbf16> to vector<1x1x8x8xbf16>
    tpu.vector_store %arg4[%c0_30, %c2, %c0_31, %c0_32], %45 {strides = array<i32>} : memref<1x4x8x8xbf16, #tpu.memory_space<vmem>>, vector<1x1x8x8xbf16>,
    %46 = vector.extract_strided_slice %4 {offsets = [0, 48], sizes = [8, 8], strides = [1, 1]} : vector<8x96xf32> to vector<8x8xf32>
    %47 = arith.truncf %46 : vector<8x8xf32> to vector<8x8xbf16>
    %c0_33 = arith.constant 0 : index
    %c2_34 = arith.constant 2 : index
    %c0_35 = arith.constant 0 : index
    %c0_36 = arith.constant 0 : index
    %48 = vector.load %arg5[%c0_33, %c2_34, %c0_35, %c0_36] : memref<1x4x8x8xbf16, #tpu.memory_space<vmem>>, vector<1x1x8x8xbf16>
    %49 = vector.shape_cast %48 : vector<1x1x8x8xbf16> to vector<8x8xbf16>
    %50 = vector.shape_cast %47 : vector<8x8xbf16> to vector<1x1x8x8xbf16>
    tpu.vector_store %arg5[%c0_33, %c2_34, %c0_35, %c0_36], %50 {strides = array<i32>} : memref<1x4x8x8xbf16, #tpu.memory_space<vmem>>, vector<1x1x8x8xbf16>,
    %51 = vector.extract_strided_slice %4 {offsets = [0, 80], sizes = [8, 8], strides = [1, 1]} : vector<8x96xf32> to vector<8x8xf32>
    %52 = arith.truncf %51 : vector<8x8xf32> to vector<8x8xbf16>
    %c0_37 = arith.constant 0 : index
    %c2_38 = arith.constant 2 : index
    %c0_39 = arith.constant 0 : index
    %c0_40 = arith.constant 0 : index
    %53 = vector.load %arg6[%c0_37, %c2_38, %c0_39, %c0_40] : memref<1x4x8x8xbf16, #tpu.memory_space<vmem>>, vector<1x1x8x8xbf16>
    %54 = vector.shape_cast %53 : vector<1x1x8x8xbf16> to vector<8x8xbf16>
    %55 = vector.shape_cast %52 : vector<8x8xbf16> to vector<1x1x8x8xbf16>
    tpu.vector_store %arg6[%c0_37, %c2_38, %c0_39, %c0_40], %55 {strides = array<i32>} : memref<1x4x8x8xbf16, #tpu.memory_space<vmem>>, vector<1x1x8x8xbf16>,
    %56 = vector.extract_strided_slice %4 {offsets = [0, 24], sizes = [8, 8], strides = [1, 1]} : vector<8x96xf32> to vector<8x8xf32>
    %cst_41 = arith.constant 0.353553385 : f32
    %57 = vector.broadcast %cst_41 : f32 to vector<8x8xf32>
    %58 = arith.mulf %56, %57 : vector<8x8xf32>
    %59 = arith.truncf %58 : vector<8x8xf32> to vector<8x8xbf16>
    %c0_42 = arith.constant 0 : index
    %c3 = arith.constant 3 : index
    %c0_43 = arith.constant 0 : index
    %c0_44 = arith.constant 0 : index
    %60 = vector.load %arg4[%c0_42, %c3, %c0_43, %c0_44] : memref<1x4x8x8xbf16, #tpu.memory_space<vmem>>, vector<1x1x8x8xbf16>
    %61 = vector.shape_cast %60 : vector<1x1x8x8xbf16> to vector<8x8xbf16>
    %62 = vector.shape_cast %59 : vector<8x8xbf16> to vector<1x1x8x8xbf16>
    tpu.vector_store %arg4[%c0_42, %c3, %c0_43, %c0_44], %62 {strides = array<i32>} : memref<1x4x8x8xbf16, #tpu.memory_space<vmem>>, vector<1x1x8x8xbf16>,
    %63 = vector.extract_strided_slice %4 {offsets = [0, 56], sizes = [8, 8], strides = [1, 1]} : vector<8x96xf32> to vector<8x8xf32>
    %64 = arith.truncf %63 : vector<8x8xf32> to vector<8x8xbf16>
    %c0_45 = arith.constant 0 : index
    %c3_46 = arith.constant 3 : index
    %c0_47 = arith.constant 0 : index
    %c0_48 = arith.constant 0 : index
    %65 = vector.load %arg5[%c0_45, %c3_46, %c0_47, %c0_48] : memref<1x4x8x8xbf16, #tpu.memory_space<vmem>>, vector<1x1x8x8xbf16>
    %66 = vector.shape_cast %65 : vector<1x1x8x8xbf16> to vector<8x8xbf16>
    %67 = vector.shape_cast %64 : vector<8x8xbf16> to vector<1x1x8x8xbf16>
    tpu.vector_store %arg5[%c0_45, %c3_46, %c0_47, %c0_48], %67 {strides = array<i32>} : memref<1x4x8x8xbf16, #tpu.memory_space<vmem>>, vector<1x1x8x8xbf16>,
    %68 = vector.extract_strided_slice %4 {offsets = [0, 88], sizes = [8, 8], strides = [1, 1]} : vector<8x96xf32> to vector<8x8xf32>
    %69 = arith.truncf %68 : vector<8x8xf32> to vector<8x8xbf16>
    %c0_49 = arith.constant 0 : index
    %c3_50 = arith.constant 3 : index
    %c0_51 = arith.constant 0 : index
    %c0_52 = arith.constant 0 : index
    %70 = vector.load %arg6[%c0_49, %c3_50, %c0_51, %c0_52] : memref<1x4x8x8xbf16, #tpu.memory_space<vmem>>, vector<1x1x8x8xbf16>
    %71 = vector.shape_cast %70 : vector<1x1x8x8xbf16> to vector<8x8xbf16>
    %72 = vector.shape_cast %69 : vector<8x8xbf16> to vector<1x1x8x8xbf16>
    tpu.vector_store %arg6[%c0_49, %c3_50, %c0_51, %c0_52], %72 {strides = array<i32>} : memref<1x4x8x8xbf16, #tpu.memory_space<vmem>>, vector<1x1x8x8xbf16>,
    return
  }
  func.func @transform_0(%arg0: i32, %arg1: i32) -> (i32, i32, i32) {
    %c0_i32 = arith.constant 0 : i32
    %c0_i32_0 = arith.constant 0 : i32
    return %arg0, %arg1, %c0_i32 : i32, i32, i32
  }
  func.func @transform_1(%arg0: i32, %arg1: i32) -> (i32, i32) {
    %c0_i32 = arith.constant 0 : i32
    %c0_i32_0 = arith.constant 0 : i32
    %c0_i32_1 = arith.constant 0 : i32
    return %c0_i32, %c0_i32_0 : i32, i32
  }
  func.func @transform_2(%arg0: i32, %arg1: i32) -> (i32, i32, i32, i32) {
    %c0_i32 = arith.constant 0 : i32
    %c0_i32_0 = arith.constant 0 : i32
    %c0_i32_1 = arith.constant 0 : i32
    return %arg0, %c0_i32, %arg1, %c0_i32_0 : i32, i32, i32, i32
  }
  func.func @transform_3(%arg0: i32, %arg1: i32) -> (i32, i32, i32, i32) {
    %c0_i32 = arith.constant 0 : i32
    %c0_i32_0 = arith.constant 0 : i32
    %c0_i32_1 = arith.constant 0 : i32
    return %arg0, %c0_i32, %arg1, %c0_i32_0 : i32, i32, i32, i32
  }
  func.func @transform_4(%arg0: i32, %arg1: i32) -> (i32, i32, i32, i32) {
    %c0_i32 = arith.constant 0 : i32
    %c0_i32_0 = arith.constant 0 : i32
    %c0_i32_1 = arith.constant 0 : i32
    return %arg0, %c0_i32, %arg1, %c0_i32_0 : i32, i32, i32, i32
  }
}

</mosaic_0001>

<llo_original>
// kernel: tpu_custom_call.1
$region0: #{tpu_custom_call.1}
  #allocation0 [shape = 'u32[]', space=smem, size = 0x4, offset = 0x4, fixed_abs, tag = 'smem constant byte address 0x4 - core index']
  #allocation1 [shape = 'u32[144,128]{1,0:T(1,128)}', space=vmem, size = 0x12000, scoped, tag = 'internal scratch']
  %s0 = inlined_call_operand.hbm [shape: f32[2,8,32], index: 0, kind: input, shape index: {}]
  %s1 = inlined_call_operand.hbm [shape: bf16[32,96], index: 1, kind: input, shape index: {}]
  %s2 = inlined_call_operand.hbm [shape: bf16[2,4,8,8], index: 2, kind: output, shape index: {0}]
  %s3 = inlined_call_operand.hbm [shape: bf16[2,4,8,8], index: 3, kind: output, shape index: {1}]
  %s4 = inlined_call_operand.hbm [shape: bf16[2,4,8,8], index: 4, kind: output, shape index: {2}]
  %5 = xla_tuple %s2, %s3, %s4
  %s6 = sld [smem:[#allocation0]]
  $region65: #{tpu_custom_call.1} parent=0
    _
  %s8 = ssub.s32 1, %s6
  %s9 = scalar_select 0, %s8, %s6
  $region1: #{tpu_custom_call.1} parent=0
    #allocation2 [shape = 'u8[8192]{0}', space=vmem, size = 0x2000, scoped, tag = 'input window, operand 0']
    #allocation3 [shape = 's32[2]{0}', space=sflag, size = 0x8, scoped, tag = 'scoped memory for tpu_custom_call.1']
    #allocation4 [shape = 's32[2]{0}', space=sflag, size = 0x8, scoped, tag = 'scoped memory for tpu_custom_call.1']
    #allocation5 [shape = 'u8[8192]{0}', space=vmem, size = 0x2000, scoped, tag = 'input window, operand 1, single buffered']
    #allocation6 [shape = 's32[1]{0}', space=sflag, size = 0x4, scoped, tag = 'scoped memory for tpu_custom_call.1']
    #allocation7 [shape = 'u8[16384]{0}', space=vmem, size = 0x4000, scoped, tag = 'output window, operand 0']
    #allocation8 [shape = 'u8[16384]{0}', space=vmem, size = 0x4000, scoped, tag = 'output window, operand 1']
    #allocation9 [shape = 's32[2]{0}', space=sflag, size = 0x8, scoped, tag = 'scoped memory for tpu_custom_call.1']
    #allocation10 [shape = 'u8[16384]{0}', space=vmem, size = 0x4000, scoped, tag = 'output window, operand 2']
    %10 = vsyncpa [#allocation3], 0
    %s11 = scalar_lea.sflag [#allocation3], 1
    %12 = vsyncpa %s11, 0
    %13 = vsyncpa [#allocation6], 0
    %14 = vsyncpa [#allocation4], 0
    %s15 = scalar_lea.sflag [#allocation4], 1
    %16 = vsyncpa %s15, 0
    %17 = vsyncpa [#allocation9], 0
    %s18 = scalar_lea.sflag [#allocation9], 1
    %19 = vsyncpa %s18, 0
    loop: start=0, step=1, limit=4
    $region2: #{tpu_custom_call.1} parent=1 // loop_pre_header
      _
    $region3: #{tpu_custom_call.1} parent=1 // loop_header
      %s21 = sphi 0, %s25
      %p22 = scmp.ge.s32.totalorder %s21, 4
      %s28 = sphi 0, %s40
      %s29 = sphi 0, %s36
      %s30 = sphi 0, %s28
      %s31 = sphi 0, %s29
      %s32 = sphi 0, %s30
      %s33 = sphi 0, %s31
      %s45 = sphi 0, %s47
      %s48 = sphi 0, %s45
      %s49 = sphi 0, %s48
      %s65 = sphi 0, %s49
      %s69 = sphi 0, %s69
      %s71 = sphi 0, %s69
      %s72 = sphi 0, %s71
      %s86 = sphi 0, %s72
      %s94 = sphi 0, %s96
      %s97 = sphi 0, %s94
      %s98 = sphi 0, %s97
      %s114 = sphi 0, %s98
      %s122 = sphi 0, %s124
      %s125 = sphi 0, %s122
      %s126 = sphi 0, %s125
      %s142 = sphi 0, %s126
      %s150 = sphi 0, %s152
      %s153 = sphi 0, %s150
      %s154 = sphi 0, %s153
      %s170 = sphi 0, %s154
    $region4: #{tpu_custom_call.1} parent=1 // loop_header_branch
      %24 = sbr.rel (%p22) target = $region8
    $region5: #{tpu_custom_call.1} parent=1 // loop_body
      %s26 = ssub.s32 %s21, 1
      %s27 = ssub.s32 %s21, 2
      %s34 = sadd.s32 1, %s29
      %p35 = scmp.ge.s32.totalorder %s34, 1
      %s36 = scalar_select %p35, 0, %s34
      %s37 = sadd.s32 1, %s28
      %s38 = scalar_select %p35, %s37, %s28
      %p39 = scmp.ge.s32.totalorder %s38, 2
      %s40 = scalar_select %p39, 0, %s38
      %s41 = ssub.s32 %s28, %s40
      %s42 = ssub.s32 %s29, %s36
      %s43 = sor.u32 %s41, %s42
      %p44 = scmp.eq.s32.totalorder %s43, 0
      %s46 = sadd.s32 %s45, 1
      %s47 = scalar_select %p44, %s45, %s46
      %p50 = pneg %p44
      %p51 = scmp.eq.s32.totalorder %s21, 1
      %p52 = por %p50, %p51
      %p53 = scmp.ne.s32.totalorder %s45, %s48
      %p54 = scmp.eq.s32.totalorder %s21, 0
      %p55 = por %p53, %p54
      %p56 = scmp.ne.s32.totalorder %s45, %s48
      %p57 = scmp.eq.s32.totalorder %s26, 1
      %p58 = por %p56, %p57
      %p59 = scmp.ne.s32.totalorder %s48, %s49
      %p60 = scmp.eq.s32.totalorder %s26, 0
      %p61 = por %p59, %p60
      %p62 = scmp.ne.s32.totalorder %s48, %s49
      %p63 = scmp.eq.s32.totalorder %s27, 1
      %p64 = por %p62, %p63
      %p66 = scmp.ne.s32.totalorder %s49, %s65
      %p67 = scmp.eq.s32.totalorder %s27, 0
      %p68 = por %p66, %p67
      %s70 = sadd.s32 %s69, 1
      %p73 = scmp.eq.s32.totalorder %s21, 1
      %p74 = scmp.ne.s32.totalorder %s69, %s71
      %p75 = scmp.eq.s32.totalorder %s21, 0
      %p76 = por %p74, %p75
      %p77 = scmp.ne.s32.totalorder %s69, %s71
      %p78 = scmp.eq.s32.totalorder %s26, 1
      %p79 = por %p77, %p78
      %p80 = scmp.ne.s32.totalorder %s71, %s72
      %p81 = scmp.eq.s32.totalorder %s26, 0
      %p82 = por %p80, %p81
      %p83 = scmp.ne.s32.totalorder %s71, %s72
      %p84 = scmp.eq.s32.totalorder %s27, 1
      %p85 = por %p83, %p84
      %p87 = scmp.ne.s32.totalorder %s72, %s86
      %p88 = scmp.eq.s32.totalorder %s27, 0
      %p89 = por %p87, %p88
      %s90 = ssub.s32 %s28, %s40
      %s91 = ssub.s32 %s29, %s36
      %s92 = sor.u32 %s90, %s91
      %p93 = scmp.eq.s32.totalorder %s92, 0
      %s95 = sadd.s32 %s94, 1
      %s96 = scalar_select %p93, %s94, %s95
      %p99 = pneg %p93
      %p100 = scmp.eq.s32.totalorder %s21, 1
      %p101 = por %p99, %p100
      %p102 = scmp.ne.s32.totalorder %s94, %s97
      %p103 = scmp.eq.s32.totalorder %s21, 0
      %p104 = por %p102, %p103
      %p105 = scmp.ne.s32.totalorder %s94, %s97
      %p106 = scmp.eq.s32.totalorder %s26, 1
      %p107 = por %p105, %p106
      %p108 = scmp.ne.s32.totalorder %s97, %s98
      %p109 = scmp.eq.s32.totalorder %s26, 0
      %p110 = por %p108, %p109
      %p111 = scmp.ne.s32.totalorder %s97, %s98
      %p112 = scmp.eq.s32.totalorder %s27, 1
      %p113 = por %p111, %p112
      %p115 = scmp.ne.s32.totalorder %s98, %s114
      %p116 = scmp.eq.s32.totalorder %s27, 0
      %p117 = por %p115, %p116
      %s118 = ssub.s32 %s28, %s40
      %s119 = ssub.s32 %s29, %s36
      %s120 = sor.u32 %s118, %s119
      %p121 = scmp.eq.s32.totalorder %s120, 0
      %s123 = sadd.s32 %s122, 1
      %s124 = scalar_select %p121, %s122, %s123
      %p127 = pneg %p121
      %p128 = scmp.eq.s32.totalorder %s21, 1
      %p129 = por %p127, %p128
      %p130 = scmp.ne.s32.totalorder %s122, %s125
      %p131 = scmp.eq.s32.totalorder %s21, 0
      %p132 = por %p130, %p131
      %p133 = scmp.ne.s32.totalorder %s122, %s125
      %p134 = scmp.eq.s32.totalorder %s26, 1
      %p135 = por %p133, %p134
      %p136 = scmp.ne.s32.totalorder %s125, %s126
      %p137 = scmp.eq.s32.totalorder %s26, 0
      %p138 = por %p136, %p137
      %p139 = scmp.ne.s32.totalorder %s125, %s126
      %p140 = scmp.eq.s32.totalorder %s27, 1
      %p141 = por %p139, %p140
      %p143 = scmp.ne.s32.totalorder %s126, %s142
      %p144 = scmp.eq.s32.totalorder %s27, 0
      %p145 = por %p143, %p144
      %s146 = ssub.s32 %s28, %s40
      %s147 = ssub.s32 %s29, %s36
      %s148 = sor.u32 %s146, %s147
      %p149 = scmp.eq.s32.totalorder %s148, 0
      %s151 = sadd.s32 %s150, 1
      %s152 = scalar_select %p149, %s150, %s151
      %p155 = pneg %p149
      %p156 = scmp.eq.s32.totalorder %s21, 1
      %p157 = por %p155, %p156
      %p158 = scmp.ne.s32.totalorder %s150, %s153
      %p159 = scmp.eq.s32.totalorder %s21, 0
      %p160 = por %p158, %p159
      %p161 = scmp.ne.s32.totalorder %s150, %s153
      %p162 = scmp.eq.s32.totalorder %s26, 1
      %p163 = por %p161, %p162
      %p164 = scmp.ne.s32.totalorder %s153, %s154
      %p165 = scmp.eq.s32.totalorder %s26, 0
      %p166 = por %p164, %p165
      %p167 = scmp.ne.s32.totalorder %s153, %s154
      %p168 = scmp.eq.s32.totalorder %s27, 1
      %p169 = por %p167, %p168
      %p171 = scmp.ne.s32.totalorder %s154, %s170
      %p172 = scmp.eq.s32.totalorder %s27, 0
      %p173 = por %p171, %p172
      %p174 = scmp.le.s32.totalorder 1, %s21
      %p175 = scmp.lt.s32.totalorder %s21, 3
      %p176 = pnand %p174, %p175
      %p177 = pneg %p176
      // Predicated region
      $region9: #{tpu_custom_call.1} parent=5 // pred_check
        _
      $region10: #{tpu_custom_call.1} parent=5 // pred_check_branch
        %179 = sbr.rel (%p176) target = $region12
      $region11: #{tpu_custom_call.1} parent=5 // pred_region
        %s180 = ssub.s32 %s21, 1
        // Predicated region
        $region13: #{tpu_custom_call.1} parent=11 // pred_check
          %p181 = pneg %p82
        $region14: #{tpu_custom_call.1} parent=11 // pred_check_branch
          %183 = sbr.rel (%p181) target = $region16
        $region15: #{tpu_custom_call.1} parent=11 // pred_region
          %s185 = ssub.s32 256, 256
          %186 = vsyncadd [#allocation6], %s185
          %s187 = sshll.u32 [#allocation5], 4
          %s188 = int_to_ptr.vmem [resolvable:$true] %s187
          %193 = dma.hbm_to_vmem [thread:$0]  %s1, 256, %s188, [#allocation6], 64, 64, 4
        $region16: #{tpu_custom_call.1} parent=11 // pred_fallthru
          _
      $region12: #{tpu_custom_call.1} parent=5 // pred_fallthru
        _
      %p194 = scmp.lt.s32.totalorder %s21, 2
      // Predicated region
      $region17: #{tpu_custom_call.1} parent=5 // pred_check
        %p195 = pneg %p194
      $region18: #{tpu_custom_call.1} parent=5 // pred_check_branch
        %197 = sbr.rel (%p195) target = $region20
      $region19: #{tpu_custom_call.1} parent=5 // pred_region
        // Predicated region
        $region21: #{tpu_custom_call.1} parent=19 // pred_check
          %p198 = pneg %p55
        $region22: #{tpu_custom_call.1} parent=19 // pred_check_branch
          %200 = sbr.rel (%p198) target = $region24
        $region23: #{tpu_custom_call.1} parent=19 // pred_region
          %s201 = sand.u32 %s45, 1
          %s202 = scalar_lea.sflag [#allocation3], %s201
          %s203 = sand.u32 %s45, 1
          %s204 = smul.addr %s203, 8
          %s205 = scalar_lea.vmem [#allocation2], %s204
          %s207 = ssub.s32 128, 128
          %208 = vsyncadd %s202, %s207
          %s209 = sadd.s32 %s29, %s28
          %s210 = smul.addr %s209, 128
          %s211 = scalar_lea.hbm %s0, %s210
          %s213 = sshll.u32 %s205, 4
          %s214 = int_to_ptr.vmem [resolvable:$true] %s213
          %216 = dma.hbm_to_vmem [thread:$0]  %s211, 128, %s214, %s202
        $region24: #{tpu_custom_call.1} parent=19 // pred_fallthru
          _
      $region20: #{tpu_custom_call.1} parent=5 // pred_fallthru
        _
      %p217 = scmp.le.s32.totalorder 1, %s21
      %p218 = scmp.lt.s32.totalorder %s21, 3
      %p219 = pnand %p217, %p218
      %p220 = pneg %p219
      // Predicated region
      $region25: #{tpu_custom_call.1} parent=5 // pred_check
        _
      $region26: #{tpu_custom_call.1} parent=5 // pred_check_branch
        %222 = sbr.rel (%p219) target = $region28
      $region27: #{tpu_custom_call.1} parent=5 // pred_region
        %s223 = ssub.s32 %s21, 1
        %s224 = sand.u32 %s48, 1
        %s225 = scalar_lea.sflag [#allocation3], %s224
        %s226 = sand.u32 %s48, 1
        %s227 = smul.addr %s226, 8
        %s228 = scalar_lea.vmem [#allocation2], %s227
        // Predicated region
        $region29: #{tpu_custom_call.1} parent=27 // pred_check
          %p229 = pneg %p61
        $region30: #{tpu_custom_call.1} parent=27 // pred_check_branch
          %231 = sbr.rel (%p229) target = $region32
        $region31: #{tpu_custom_call.1} parent=27 // pred_region
          %232 = dma.done %s225, 128
        $region32: #{tpu_custom_call.1} parent=27 // pred_fallthru
          _
        // Predicated region
        $region33: #{tpu_custom_call.1} parent=27 // pred_check
          %p233 = pneg %p82
        $region34: #{tpu_custom_call.1} parent=27 // pred_check_branch
          %235 = sbr.rel (%p233) target = $region36
        $region35: #{tpu_custom_call.1} parent=27 // pred_region
          %236 = dma.done [#allocation6], 256
        $region36: #{tpu_custom_call.1} parent=27 // pred_fallthru
          _
        %s237 = sand.u32 %s48, 1
        %s238 = scalar_lea.sflag [#allocation3], %s237
        %s239 = sand.u32 %s48, 1
        %s240 = smul.addr %s239, 8
        %s241 = scalar_lea.vmem [#allocation2], %s240
        %p242 = pneg %p61
        %p243 = pneg %p58
        %p244 = pneg %p82
        %p245 = pneg %p79
        %p246 = pneg %p110
        %p247 = pneg %p107
        %s248 = sand.u32 %s97, 1
        %s249 = scalar_lea.sflag [#allocation4], %s248
        %s250 = sand.u32 %s97, 1
        %s251 = smul.addr %s250, 16
        %s252 = scalar_lea.vmem [#allocation7], %s251
        %p253 = pneg %p138
        %p254 = pneg %p135
        %s255 = sand.u32 %s26, 1
        %s256 = scalar_lea.sflag [#allocation9], %s255
        %s257 = sand.u32 %s125, 1
        %s258 = smul.addr %s257, 16
        %s259 = scalar_lea.vmem [#allocation8], %s258
        %p260 = pneg %p166
        %p261 = pneg %p163
        %s262 = sand.u32 %s26, 1
        %s263 = scalar_lea.sflag [#allocation9], %s262
        %s264 = sand.u32 %s153, 1
        %s265 = smul.addr %s264, 16
        %s266 = scalar_lea.vmem [#allocation10], %s265
        %v268 = vld [vmem:[%s228] sm:$0xff]
        %v269 = vpack.c.bf16 %v268, %v268
        %v270 = vld [vmem:[#allocation5] sm:$0xf]
        %v271 = vld [vmem:[#allocation5 + $0x4] sm:$0xf]
        %v272 = vld [vmem:[#allocation5 + $0x8] sm:$0xf]
        %v273 = vld [vmem:[#allocation5 + $0xc] sm:$0xf]
        %v278 = vunpack.c.l.b16 %v270
        %v279 = vunpack.c.l.b16 %v271
        %v280 = vunpack.c.l.b16 %v272
        %v281 = vunpack.c.l.b16 %v273
        %v282 = vpack.c.b16 %v279, %v278
        %v283 = vpack.c.b16 %v281, %v280
        %vm286 = vcmask 261120
        %v288 = vsel %vm286, %v269, 0
        %290 = vmatprep.subr.bf16.mxu0 0
        %291 = vmatpush1.bf16.msra.mxu0 %v282
        %292 = vmatprep.subr.bf16.mxu0 0
        %293 = vmatpush1.bf16.msra.mxu0 %v283
        %294 = vmatprep.subr.bf16.mxu0 0
        %295 = vmatpush1.bf16.msra.mxu0 0
        %296 = vmatprep.subr.bf16.mxu0 0
        %297 = vmatpush1.bf16.msra.mxu0 0
        %298 = vmatprep.subr.bf16.mxu0 0
        %299 = vmatpush1.bf16.msra.mxu0 0
        %300 = vmatprep.subr.bf16.mxu0 0
        %301 = vmatpush1.bf16.msra.mxu0 0
        %302 = vmatprep.subr.bf16.mxu0 0
        %303 = vmatpush1.bf16.msra.mxu0 0
        %304 = vmatprep.subr.bf16.mxu0 0
        %305 = vmatpush1.bf16.msra.mxu0 0
        %306 = vmatprep.subr.bf16.mxu0 0
        %307 = vmatpush1.bf16.msra.mxu0 0
        %308 = vmatprep.subr.bf16.mxu0 0
        %309 = vmatpush1.bf16.msra.mxu0 0
        %310 = vmatprep.subr.bf16.mxu0 0
        %311 = vmatpush1.bf16.msra.mxu0 0
        %312 = vmatprep.subr.bf16.mxu0 0
        %313 = vmatpush1.bf16.msra.mxu0 0
        %314 = vmatprep.subr.bf16.mxu0 0
        %315 = vmatpush1.bf16.msra.mxu0 0
        %316 = vmatprep.subr.bf16.mxu0 0
        %317 = vmatpush1.bf16.msra.mxu0 0
        %318 = vmatprep.subr.bf16.mxu0 0
        %319 = vmatpush1.bf16.msra.mxu0 0
        %320 = vmatprep.subr.bf16.mxu0 0
        %321 = vmatpush1.bf16.msra.mxu0 0
        %322 = vmatprep.mubr.bf16.mxu0 0
        %323 = vmatmul.mubr.bf16.gmra.mrb[0].mxu0 %v288
        %v324 = vpop.f32.mrb[0].mxu0
        %v325 = vadd.f32 0.0, %v324
        %v326 = vpop.f32.mrb[0].mxu0
        %v327 = vpop.f32.mrb[0].mxu0
        %v328 = vpop.f32.mrb[0].mxu0
        %329 = vdwg.mxu0
        %v330 = vmul.f32 %v325, 0.35355338
        %v331 = vpack.c.bf16 %v330, %v330
        %vm332 = vcmask 60416
        %333 = vst.msk [vmem:[%s252] sm:$0xf] %vm332, %v331
        %v334 = vpack.c.bf16 %v325, %v325
        %v336 = vunpack.c.l.b16 %v334
        %v337 = vpack.c.b16 %v336, %v336
        %338 = vrot.lane.b32.xlu0 %v337, 96
        %v339 = vpop.permute.xlu0 %338
        %341 = vst.msk [vmem:[%s259] sm:$0xf] %vm332, %v339
        %342 = vrot.lane.b32.xlu0 %v337, 64
        %v343 = vpop.permute.xlu0 %342
        %345 = vst.msk [vmem:[%s266] sm:$0xf] %vm332, %v343
        %v347 = vunpack.c.l.b16 %v331
        %v348 = vpack.c.b16 %v347, %v347
        %349 = vrot.lane.b32.xlu0 %v348, 120
        %v350 = vpop.permute.xlu0 %349
        %s352 = scalar_lea.vmem %s252, 4 [#allocation7]
        %353 = vst.msk [vmem:[%s352] sm:$0xf] %vm332, %v350
        %354 = vrot.lane.b32.xlu0 %v337, 88
        %v355 = vpop.permute.xlu0 %354
        %s357 = scalar_lea.vmem %s259, 4 [#allocation8]
        %358 = vst.msk [vmem:[%s357] sm:$0xf] %vm332, %v355
        %359 = vrot.lane.b32.xlu0 %v337, 56
        %v360 = vpop.permute.xlu0 %359
        %s362 = scalar_lea.vmem %s266, 4 [#allocation10]
        %363 = vst.msk [vmem:[%s362] sm:$0xf] %vm332, %v360
        %364 = vrot.lane.b32.xlu0 %v348, 112
        %v365 = vpop.permute.xlu0 %364
        %s367 = scalar_lea.vmem %s252, 8 [#allocation7]
        %368 = vst.msk [vmem:[%s367] sm:$0xf] %vm332, %v365
        %369 = vrot.lane.b32.xlu0 %v337, 80
        %v370 = vpop.permute.xlu0 %369
        %s372 = scalar_lea.vmem %s259, 8 [#allocation8]
        %373 = vst.msk [vmem:[%s372] sm:$0xf] %vm332, %v370
        %374 = vrot.lane.b32.xlu0 %v337, 48
        %v375 = vpop.permute.xlu0 %374
        %s377 = scalar_lea.vmem %s266, 8 [#allocation10]
        %378 = vst.msk [vmem:[%s377] sm:$0xf] %vm332, %v375
        %379 = vrot.lane.b32.xlu0 %v348, 104
        %v380 = vpop.permute.xlu0 %379
        %s382 = scalar_lea.vmem %s252, 12 [#allocation7]
        %383 = vst.msk [vmem:[%s382] sm:$0xf] %vm332, %v380
        %384 = vrot.lane.b32.xlu0 %v337, 72
        %v385 = vpop.permute.xlu0 %384
        %s387 = scalar_lea.vmem %s259, 12 [#allocation8]
        %388 = vst.msk [vmem:[%s387] sm:$0xf] %vm332, %v385
        %389 = vrot.lane.b32.xlu0 %v337, 40
        %v390 = vpop.permute.xlu0 %389
        %s392 = scalar_lea.vmem %s266, 12 [#allocation10]
        %393 = vst.msk [vmem:[%s392] sm:$0xf] %vm332, %v390
        %s394 = sand.u32 %s97, 1
        %s395 = scalar_lea.sflag [#allocation4], %s394
        %s396 = sand.u32 %s97, 1
        %s397 = smul.addr %s396, 16
        %s398 = scalar_lea.vmem [#allocation7], %s397
        %s399 = sand.u32 %s26, 1
        %s400 = scalar_lea.sflag [#allocation9], %s399
        %s401 = sand.u32 %s125, 1
        %s402 = smul.addr %s401, 16
        %s403 = scalar_lea.vmem [#allocation8], %s402
        %s404 = sand.u32 %s26, 1
        %s405 = scalar_lea.sflag [#allocation9], %s404
        %s406 = sand.u32 %s153, 1
        %s407 = smul.addr %s406, 16
        %s408 = scalar_lea.vmem [#allocation10], %s407
        // Predicated region
        $region37: #{tpu_custom_call.1} parent=27 // pred_check
          %p409 = pneg %p107
        $region38: #{tpu_custom_call.1} parent=27 // pred_check_branch
          %411 = sbr.rel (%p409) target = $region40
        $region39: #{tpu_custom_call.1} parent=27 // pred_region
          %s413 = ssub.s32 256, 256
          %414 = vsyncadd %s395, %s413
          %s415 = smul.addr %s30, 4
          %s416 = sadd.s32 %s31, %s415
          %s417 = smul.addr %s416, 64
          %s418 = scalar_lea.hbm %s2, %s417
          %s419 = sshll.u32 %s398, 4
          %s420 = int_to_ptr.vmem [resolvable:$true] %s419
          %425 = dma.vmem_to_hbm [thread:$0]  %s420, 256, %s418, %s395, 64, 64, 4
        $region40: #{tpu_custom_call.1} parent=27 // pred_fallthru
          _
        // Predicated region
        $region41: #{tpu_custom_call.1} parent=27 // pred_check
          %p426 = pneg %p135
        $region42: #{tpu_custom_call.1} parent=27 // pred_check_branch
          %428 = sbr.rel (%p426) target = $region44
        $region43: #{tpu_custom_call.1} parent=27 // pred_region
          %s430 = ssub.s32 256, 256
          %431 = vsyncadd %s400, %s430
          %s432 = smul.addr %s30, 4
          %s433 = sadd.s32 %s31, %s432
          %s434 = smul.addr %s433, 64
          %s435 = scalar_lea.hbm %s3, %s434
          %s436 = sshll.u32 %s403, 4
          %s437 = int_to_ptr.vmem [resolvable:$true] %s436
          %442 = dma.vmem_to_hbm [thread:$0]  %s437, 256, %s435, %s400, 64, 64, 4
        $region44: #{tpu_custom_call.1} parent=27 // pred_fallthru
          _
        // Predicated region
        $region45: #{tpu_custom_call.1} parent=27 // pred_check
          %p443 = pneg %p163
        $region46: #{tpu_custom_call.1} parent=27 // pred_check_branch
          %445 = sbr.rel (%p443) target = $region48
        $region47: #{tpu_custom_call.1} parent=27 // pred_region
          %s447 = ssub.s32 256, 256
          %448 = vsyncadd %s405, %s447
          %s449 = smul.addr %s30, 4
          %s450 = sadd.s32 %s31, %s449
          %s451 = smul.addr %s450, 64
          %s452 = scalar_lea.hbm %s4, %s451
          %s453 = sshll.u32 %s408, 4
          %s454 = int_to_ptr.vmem [resolvable:$true] %s453
          %459 = dma.vmem_to_hbm [thread:$0]  %s454, 256, %s452, %s405, 64, 64, 4
        $region48: #{tpu_custom_call.1} parent=27 // pred_fallthru
          _
      $region28: #{tpu_custom_call.1} parent=5 // pred_fallthru
        _
      %p460 = scmp.le.s32.totalorder 2, %s21
      // Predicated region
      $region49: #{tpu_custom_call.1} parent=5 // pred_check
        %p461 = pneg %p460
      $region50: #{tpu_custom_call.1} parent=5 // pred_check_branch
        %463 = sbr.rel (%p461) target = $region52
      $region51: #{tpu_custom_call.1} parent=5 // pred_region
        %s464 = ssub.s32 %s21, 2
        // Predicated region
        $region53: #{tpu_custom_call.1} parent=51 // pred_check
          %p465 = pneg %p113
        $region54: #{tpu_custom_call.1} parent=51 // pred_check_branch
          %467 = sbr.rel (%p465) target = $region56
        $region55: #{tpu_custom_call.1} parent=51 // pred_region
          %s468 = sand.u32 %s98, 1
          %s469 = scalar_lea.sflag [#allocation4], %s468
          %s470 = sand.u32 %s98, 1
          %s471 = smul.addr %s470, 16
          %s472 = scalar_lea.vmem [#allocation7], %s471
          %473 = dma.done %s469, 256
        $region56: #{tpu_custom_call.1} parent=51 // pred_fallthru
          _
        // Predicated region
        $region57: #{tpu_custom_call.1} parent=51 // pred_check
          %p474 = pneg %p141
        $region58: #{tpu_custom_call.1} parent=51 // pred_check_branch
          %476 = sbr.rel (%p474) target = $region60
        $region59: #{tpu_custom_call.1} parent=51 // pred_region
          %s477 = sand.u32 %s27, 1
          %s478 = scalar_lea.sflag [#allocation9], %s477
          %s479 = sand.u32 %s126, 1
          %s480 = smul.addr %s479, 16
          %s481 = scalar_lea.vmem [#allocation8], %s480
          %482 = dma.done %s478, 256
        $region60: #{tpu_custom_call.1} parent=51 // pred_fallthru
          _
        // Predicated region
        $region61: #{tpu_custom_call.1} parent=51 // pred_check
          %p483 = pneg %p169
        $region62: #{tpu_custom_call.1} parent=51 // pred_check_branch
          %485 = sbr.rel (%p483) target = $region64
        $region63: #{tpu_custom_call.1} parent=51 // pred_region
          %s486 = sand.u32 %s27, 1
          %s487 = scalar_lea.sflag [#allocation9], %s486
          %s488 = sand.u32 %s154, 1
          %s489 = smul.addr %s488, 16
          %s490 = scalar_lea.vmem [#allocation10], %s489
          %491 = dma.done %s487, 256
        $region64: #{tpu_custom_call.1} parent=51 // pred_fallthru
          _
      $region52: #{tpu_custom_call.1} parent=5 // pred_fallthru
        _
    $region6: #{tpu_custom_call.1} parent=1 // loop_footer
      %s25 = sadd.s32 1, %s21
    $region7: #{tpu_custom_call.1} parent=1 // loop_footer_branch
      %20 = sbr.rel target = $region3
    $region8: #{tpu_custom_call.1} parent=1 // loop_exit
      _
    %492 = vsyncpa [#allocation3], 1
    %s493 = scalar_lea.sflag [#allocation3], 1
    %494 = vsyncpa %s493, 1
    %495 = vsyncpa [#allocation6], 1
    %496 = vsyncpa [#allocation4], 1
    %s497 = scalar_lea.sflag [#allocation4], 1
    %498 = vsyncpa %s497, 1
    %499 = vsyncpa [#allocation9], 1
    %s500 = scalar_lea.sflag [#allocation9], 1
    %501 = vsyncpa %s500, 1

</llo_original>
